<compile_context>
chip_gen: v5e
topology: v5e:2x2
jax: 0.10.0
libtpu: 0.0.40
codegen_flags: <defaults>
</compile_context>

<pallas_src>
import functools

import jax
import jax.numpy as jnp
from jax.experimental import pallas as pl
from jax.experimental.pallas import tpu as pltpu


NUM_LANES = 128  # TPU vreg lane width


def _round_up(n, m):
    return ((n + m - 1) // m) * m


def _default_min_grid_steps():
    """>= 2 grid steps on v7x so 'parallel' shards the batch across its two
    TensorCores; 1 on single-TC chips (v5e/v6e) where splitting is overhead."""
    try:
        kind = jax.devices()[0].device_kind.lower()
    except Exception:
        return 1
    return 2 if "v7" in kind else 1


def prepare_params(wc, bc, wa, ba, wv, bv):
    """One-time weight preparation, hoisted out of the forward hot path.

    Inputs use (in, out) layout: wc (K, L), bc (1, L), wa (L, A), ba (1, A),
    wv (1, L) value-head row, bv (1, 1).

    Returns a dict with:
      wc  : (K, L)   f32   trunk weights (f32 matmul: K is tiny)
      bc  : (1, L)   f32
      wav : (L, 128) bf16  fused head [Wa | wv^T | 0-pad] (lane-dense)
      bav : (1, 128) f32   fused bias [ba | bv | 0-pad]
      num_actions : int
    """
    L, A = wa.shape
    head_w = _round_up(A + 1, NUM_LANES)
    wav = (
        jnp.zeros((L, head_w), jnp.float32)
        .at[:, :A].set(wa.astype(jnp.float32))
        .at[:, A].set(wv[0].astype(jnp.float32))
    )
    bav = (
        jnp.zeros((1, head_w), jnp.float32)
        .at[:, :A].set(ba.astype(jnp.float32))
        .at[:, A].set(bv[0].astype(jnp.float32))
    )
    return {
        "wc": wc.astype(jnp.float32),
        "bc": bc.astype(jnp.float32),
        "wav": wav.astype(jnp.bfloat16),
        "bav": bav,
        "num_actions": int(A),
    }


def _dueling_kernel(x_ref, wc_ref, bc_ref, wav_ref, bav_ref, o_ref, *, num_actions):
    # Trunk: relu(x @ Wc + bc).  f32 MXU (K=18 -> negligible), f32 elementwise.
    h = jnp.dot(x_ref[...], wc_ref[...], preferred_element_type=jnp.float32)
    h = jnp.maximum(h + bc_ref[...], 0.0)                        # (TB, L) f32

    # Fused heads: tanh(h @ [Wa | wv^T | 0] + [ba | bv | 0]).
    # bf16 MXU inputs, f32 accumulate; lane-dense (TB, 128).
    heads = jnp.dot(
        h.astype(jnp.bfloat16), wav_ref[...],
        preferred_element_type=jnp.float32,
    )
    heads = jnp.tanh(heads + bav_ref[...])                        # (TB, HW) f32

    adv = heads[:, :num_actions]                                  # (TB, A)
    val = heads[:, num_actions:num_actions + 1]                   # (TB, 1)
    mean_adv = jnp.mean(adv, axis=1, keepdims=True)               # (TB, 1)

    if o_ref.shape[-1] == num_actions:
        # Exact (TB, A) output (narrow store).
        o_ref[...] = (val + adv - mean_adv).astype(o_ref.dtype)
    else:
        # Lane-dense (TB, 128) slab: lanes >= num_actions hold garbage.
        o_ref[...] = (val + heads - mean_adv).astype(o_ref.dtype)


def dense_dueling_forward(x, params, *, block_batch=4096, min_grid_steps=None,
                          lane_dense_output=False):
    """x: (B, input_size) f32.  params: output of prepare_params().

    Returns (B, num_actions) f32, or (B, 128) with garbage in lanes >= A when
    lane_dense_output=True (for consumers that accept a padded slab).
    """
    B, K = x.shape
    wc, bc, wav, bav = params["wc"], params["bc"], params["wav"], params["bav"]
    A = params["num_actions"]
    L = wc.shape[1]
    HW = wav.shape[1]

    if min_grid_steps is None:
        min_grid_steps = _default_min_grid_steps()

    # Tile selection: minimal padding (at most 8*n_steps - 1 rows), at least
    # min_grid_steps steps, tile bounded by block_batch so the per-step live
    # set (~3 KB/row: h f32 + h bf16 + heads f32 + 2x-buffered x/out) stays
    # well inside the 32 MiB scoped VMEM limit on all generations.
    n_steps = max(min_grid_steps, pl.cdiv(B, block_batch))
    tb = _round_up(pl.cdiv(B, n_steps), 8)
    padded_b = n_steps * tb
    if padded_b != B:
        x = jnp.pad(x, ((0, padded_b - B), (0, 0)))

    out_w = HW if lane_dense_output else A

    out = pl.pallas_call(
        functools.partial(_dueling_kernel, num_actions=A),
        out_shape=jax.ShapeDtypeStruct((padded_b, out_w), jnp.float32),
        grid=(n_steps,),
        in_specs=[
            pl.BlockSpec((tb, K), lambda i: (i, 0)),       # x: streamed per tile
            pl.BlockSpec((K, L), lambda i: (0, 0)),        # Wc: resident
            pl.BlockSpec((1, L), lambda i: (0, 0)),        # bc: resident
            pl.BlockSpec((L, HW), lambda i: (0, 0)),       # [Wa|wv^T|0]: resident
            pl.BlockSpec((1, HW), lambda i: (0, 0)),       # [ba|bv|0]: resident
        ],
        out_specs=pl.BlockSpec((tb, out_w), lambda i: (i, 0)),
        compiler_params=pltpu.CompilerParams(
            dimension_semantics=("parallel",),             # shard batch across TCs
            vmem_limit_bytes=32 * 1024 * 1024,             # safe on v5e/v6e/v7x
        ),
    )(x, wc, bc, wav, bav)

    if padded_b == B:
        return out
    return out[:B]


def init_params(key, input_size, output_size, layer_size=256):
    """Deterministic synthetic parameters (PyTorch-Linear init, (in, out) layout)."""
    k1, k2, k3, k4, k5, k6 = jax.random.split(key, 6)
    s_c = 1.0 / jnp.sqrt(input_size)
    s_h = 1.0 / jnp.sqrt(layer_size)
    wc = jax.random.uniform(k1, (input_size, layer_size), jnp.float32, -s_c, s_c)
    bc = jax.random.uniform(k2, (1, layer_size), jnp.float32, -s_c, s_c)
    wa = jax.random.uniform(k3, (layer_size, output_size), jnp.float32, -s_h, s_h)
    ba = jax.random.uniform(k4, (1, output_size), jnp.float32, -s_h, s_h)
    wv = jax.random.uniform(k5, (1, layer_size), jnp.float32, -s_h, s_h)
    bv = jax.random.uniform(k6, (1, 1), jnp.float32, -s_h, s_h)
    return wc, bc, wa, ba, wv, bv


def reference_forward(x, wc, bc, wa, ba, wv, bv):
    """Pure-JAX f32 reference mirroring the PyTorch forward."""
    h = jax.nn.relu(x @ wc + bc)
    adv = jnp.tanh(h @ wa + ba)
    val = jnp.tanh(jnp.sum(h * wv, axis=1, keepdims=True) + bv[0, 0])
    mean_adv = jnp.mean(adv, axis=1, keepdims=True)
    return val + adv - mean_adv


if __name__ == "__main__":
    key = jax.random.PRNGKey(0)
    kx, kp = jax.random.split(key)

    batch = 30          # not a tile multiple -> exercises minimal-pad path
    input_size = 18     # tic-tac-toe: 2 planes x 9 cells
    output_size = 9     # 9 actions
    layer_size = 256

    x = jax.random.normal(kx, (batch, input_size), jnp.float32)
    raw_params = init_params(kp, input_size, output_size, layer_size)
    params = prepare_params(*raw_params)     # one-time prep, outside hot path
    ref = reference_forward(x, *raw_params)

    # Default path: generation-aware tiling, exact (B, A) output.
    out = jax.block_until_ready(dense_dueling_forward(x, params))
    assert out.shape == (batch, output_size)
    assert jnp.allclose(out, ref, atol=2e-2, rtol=2e-2), "mismatch vs. reference"

    # Multi-step + lane-dense output path (what a padded consumer / fused
    # downstream argmax would use); exercises pipelining and resident weights.
    out_pad = jax.block_until_ready(
        dense_dueling_forward(x, params, block_batch=16, min_grid_steps=2,
                              lane_dense_output=True))
    assert out_pad.shape[0] == batch and out_pad.shape[1] >= output_size
    assert jnp.allclose(out_pad[:, :output_size], ref, atol=2e-2, rtol=2e-2), \
        "mismatch vs. reference (lane-dense path)"

    print("KERNEL_OK")
</pallas_src>

<mosaic_0001>
module attributes {stable_mosaic.version = 11 : i64} {
  func.func @_dueling_kernel(%arg0: i32, %arg1: memref<32x18xf32, #tpu.memory_space<vmem>>, %arg2: memref<18x256xf32, #tpu.memory_space<vmem>>, %arg3: memref<1x256xf32, #tpu.memory_space<vmem>>, %arg4: memref<256x128xbf16, #tpu.memory_space<vmem>>, %arg5: memref<1x128xf32, #tpu.memory_space<vmem>>, %arg6: memref<32x9xf32, #tpu.memory_space<vmem>>) attributes {dimension_semantics = [#tpu.dimension_semantics<parallel>], iteration_bounds = array<i64: 1>, scalar_prefetch = 0 : i64, scratch_operands = 0 : i64, tpu.core_type = #tpu.core_type<tc>, window_params = [{transform_indices = @transform_0, window_bounds = array<i64: 32, 18>}, {pipeline_mode = #tpu.pipeline_mode<synchronous>, transform_indices = @transform_1, window_bounds = array<i64: 18, 256>}, {pipeline_mode = #tpu.pipeline_mode<synchronous>, transform_indices = @transform_2, window_bounds = array<i64: 1, 256>}, {pipeline_mode = #tpu.pipeline_mode<synchronous>, transform_indices = @transform_3, window_bounds = array<i64: 256, 128>}, {pipeline_mode = #tpu.pipeline_mode<synchronous>, transform_indices = @transform_4, window_bounds = array<i64: 1, 128>}, {transform_indices = @transform_5, window_bounds = array<i64: 32, 9>}]} {
    %c0 = arith.constant 0 : index
    %c0_0 = arith.constant 0 : index
    %0 = vector.load %arg1[%c0, %c0_0] : memref<32x18xf32, #tpu.memory_space<vmem>>, vector<32x18xf32>
    %c0_1 = arith.constant 0 : index
    %c0_2 = arith.constant 0 : index
    %1 = vector.load %arg2[%c0_1, %c0_2] : memref<18x256xf32, #tpu.memory_space<vmem>>, vector<18x256xf32>
    %cst = arith.constant dense<0.000000e+00> : vector<32x256xf32>
    %2 = tpu.matmul %0, %1, %cst {dimension_numbers = #tpu.dot_dimension_numbers<[1], [0], [0], [1], [0, 0, 1, 1], [], []>} : vector<32x18xf32>, vector<18x256xf32>, vector<32x256xf32> -> vector<32x256xf32>
    %c0_3 = arith.constant 0 : index
    %c0_4 = arith.constant 0 : index
    %3 = vector.load %arg3[%c0_3, %c0_4] : memref<1x256xf32, #tpu.memory_space<vmem>>, vector<1x256xf32>
    %4 = vector.broadcast %3 : vector<1x256xf32> to vector<32x256xf32>
    %5 = arith.addf %2, %4 : vector<32x256xf32>
    %cst_5 = arith.constant 0.000000e+00 : f32
    %6 = vector.broadcast %cst_5 : f32 to vector<32x256xf32>
    %7 = arith.maximumf %5, %6 : vector<32x256xf32>
    %8 = arith.truncf %7 : vector<32x256xf32> to vector<32x256xbf16>
    %c0_6 = arith.constant 0 : index
    %c0_7 = arith.constant 0 : index
    %9 = vector.load %arg4[%c0_6, %c0_7] : memref<256x128xbf16, #tpu.memory_space<vmem>>, vector<256x128xbf16>
    %cst_8 = arith.constant dense<0.000000e+00> : vector<32x128xf32>
    %10 = tpu.matmul %8, %9, %cst_8 {dimension_numbers = #tpu.dot_dimension_numbers<[1], [0], [0], [1], [0, 0, 1, 1], [], []>} : vector<32x256xbf16>, vector<256x128xbf16>, vector<32x128xf32> -> vector<32x128xf32>
    %c0_9 = arith.constant 0 : index
    %c0_10 = arith.constant 0 : index
    %11 = vector.load %arg5[%c0_9, %c0_10] : memref<1x128xf32, #tpu.memory_space<vmem>>, vector<1x128xf32>
    %12 = vector.broadcast %11 : vector<1x128xf32> to vector<32x128xf32>
    %13 = arith.addf %10, %12 : vector<32x128xf32>
    %14 = math.tanh %13 : vector<32x128xf32>
    %15 = vector.extract_strided_slice %14 {offsets = [0, 0], sizes = [32, 9], strides = [1, 1]} : vector<32x128xf32> to vector<32x9xf32>
    %16 = vector.extract_strided_slice %14 {offsets = [0, 9], sizes = [32, 1], strides = [1, 1]} : vector<32x128xf32> to vector<32x1xf32>
    %cst_11 = arith.constant dense<0.000000e+00> : vector<32xf32>
    %17 = vector.multi_reduction <add>, %15, %cst_11 [1] : vector<32x9xf32> to vector<32xf32>
    %18 = vector.shape_cast %17 : vector<32xf32> to vector<32x1xf32>
    %cst_12 = arith.constant 9.000000e+00 : f32
    %19 = vector.broadcast %cst_12 : f32 to vector<32x1xf32>
    %20 = arith.divf %18, %19 : vector<32x1xf32>
    %21 = vector.broadcast %16 : vector<32x1xf32> to vector<32x9xf32>
    %22 = arith.addf %21, %15 : vector<32x9xf32>
    %23 = vector.broadcast %20 : vector<32x1xf32> to vector<32x9xf32>
    %24 = arith.subf %22, %23 : vector<32x9xf32>
    %c0_13 = arith.constant 0 : index
    %c0_14 = arith.constant 0 : index
    %25 = vector.load %arg6[%c0_13, %c0_14] : memref<32x9xf32, #tpu.memory_space<vmem>>, vector<32x9xf32>
    tpu.vector_store %arg6[%c0_13, %c0_14], %24 {strides = array<i32>} : memref<32x9xf32, #tpu.memory_space<vmem>>, vector<32x9xf32>,
    return
  }
  func.func @transform_0(%arg0: i32) -> (i32, i32) {
    %c0_i32 = arith.constant 0 : i32
    %c0_i32_0 = arith.constant 0 : i32
    return %arg0, %c0_i32 : i32, i32
  }
  func.func @transform_1(%arg0: i32) -> (i32, i32) {
    %c0_i32 = arith.constant 0 : i32
    %c0_i32_0 = arith.constant 0 : i32
    %c0_i32_1 = arith.constant 0 : i32
    return %c0_i32, %c0_i32_0 : i32, i32
  }
  func.func @transform_2(%arg0: i32) -> (i32, i32) {
    %c0_i32 = arith.constant 0 : i32
    %c0_i32_0 = arith.constant 0 : i32
    %c0_i32_1 = arith.constant 0 : i32
    return %c0_i32, %c0_i32_0 : i32, i32
  }
  func.func @transform_3(%arg0: i32) -> (i32, i32) {
    %c0_i32 = arith.constant 0 : i32
    %c0_i32_0 = arith.constant 0 : i32
    %c0_i32_1 = arith.constant 0 : i32
    return %c0_i32, %c0_i32_0 : i32, i32
  }
  func.func @transform_4(%arg0: i32) -> (i32, i32) {
    %c0_i32 = arith.constant 0 : i32
    %c0_i32_0 = arith.constant 0 : i32
    %c0_i32_1 = arith.constant 0 : i32
    return %c0_i32, %c0_i32_0 : i32, i32
  }
  func.func @transform_5(%arg0: i32) -> (i32, i32) {
    %c0_i32 = arith.constant 0 : i32
    %c0_i32_0 = arith.constant 0 : i32
    return %arg0, %c0_i32 : i32, i32
  }
}

</mosaic_0001>

<llo_original>
// kernel: tpu_custom_call.1
$region0: #{tpu_custom_call.1}
  #allocation0 [shape = 'u32[]', space=smem, size = 0x4, offset = 0x4, fixed_abs, tag = 'smem constant byte address 0x4 - core index']
  #allocation1 [shape = 'u32[72,128]{1,0:T(1,128)}', space=vmem, size = 0x9000, scoped, tag = 'internal scratch']
  %s0 = inlined_call_operand.vmem [shape: f32[32,18], index: 0, kind: input, shape index: {}]
  %s1 = inlined_call_operand.vmem [shape: f32[18,256], index: 1, kind: input, shape index: {}]
  %s2 = inlined_call_operand.vmem [shape: f32[1,256], index: 2, kind: input, shape index: {}]
  %s3 = inlined_call_operand.hbm [shape: bf16[256,128], index: 3, kind: input, shape index: {}]
  %s4 = inlined_call_operand.vmem [shape: f32[1,128], index: 4, kind: input, shape index: {}]
  %s5 = inlined_call_operand.vmem [shape: f32[32,9], index: 5, kind: output, shape index: {}]
  %s6 = sld [smem:[#allocation0]]
  $region34: #{tpu_custom_call.1} parent=0
    _
  %s8 = ssub.s32 1, %s6
  %s9 = scalar_select 0, %s8, %s6
  $region1: #{tpu_custom_call.1} parent=0
    #allocation2 [shape = 'u8[65536]{0}', space=vmem, size = 0x10000, scoped, tag = 'input window, operand 3, single buffered']
    #allocation3 [shape = 's32[1]{0}', space=sflag, size = 0x4, scoped, tag = 'scoped memory for tpu_custom_call.1']
    %10 = vsyncpa [#allocation3], 0
    // Predicated region
    $region2: #{tpu_custom_call.1} parent=1 // pred_check
      _
    $region3: #{tpu_custom_call.1} parent=1 // pred_check_branch
      %12 = sbr.rel (0) target = $region5
    $region4: #{tpu_custom_call.1} parent=1 // pred_region
      _
    $region5: #{tpu_custom_call.1} parent=1 // pred_fallthru
      _
    // Predicated region
    $region6: #{tpu_custom_call.1} parent=1 // pred_check
      _
    $region7: #{tpu_custom_call.1} parent=1 // pred_check_branch
      %14 = sbr.rel (0) target = $region9
    $region8: #{tpu_custom_call.1} parent=1 // pred_region
      _
    $region9: #{tpu_custom_call.1} parent=1 // pred_fallthru
      _
    // Predicated region
    $region10: #{tpu_custom_call.1} parent=1 // pred_check
      _
    $region11: #{tpu_custom_call.1} parent=1 // pred_check_branch
      %16 = sbr.rel (0) target = $region13
    $region12: #{tpu_custom_call.1} parent=1 // pred_region
      _
    $region13: #{tpu_custom_call.1} parent=1 // pred_fallthru
      _
    // Predicated region
    $region14: #{tpu_custom_call.1} parent=1 // pred_check
      _
    $region15: #{tpu_custom_call.1} parent=1 // pred_check_branch
      %18 = sbr.rel (0) target = $region17
    $region16: #{tpu_custom_call.1} parent=1 // pred_region
      %20 = vsyncadd [#allocation3], 0
      %s21 = sshll.u32 %s3, 4
      %s22 = int_to_ptr.hbm [resolvable:$true] %s21
      %s23 = sshll.u32 [#allocation2], 4
      %s24 = int_to_ptr.vmem [resolvable:$true] %s23
      %29 = dma.hbm_to_vmem [thread:$0]  %s22, 2048, %s24, [#allocation3], 64, 64, 4
    $region17: #{tpu_custom_call.1} parent=1 // pred_fallthru
      _
    // Predicated region
    $region18: #{tpu_custom_call.1} parent=1 // pred_check
      _
    $region19: #{tpu_custom_call.1} parent=1 // pred_check_branch
      %31 = sbr.rel (0) target = $region21
    $region20: #{tpu_custom_call.1} parent=1 // pred_region
      _
    $region21: #{tpu_custom_call.1} parent=1 // pred_fallthru
      _
    // Predicated region
    $region22: #{tpu_custom_call.1} parent=1 // pred_check
      _
    $region23: #{tpu_custom_call.1} parent=1 // pred_check_branch
      %33 = sbr.rel (0) target = $region25
    $region24: #{tpu_custom_call.1} parent=1 // pred_region
      %35 = dma.done [#allocation3], 2048
    $region25: #{tpu_custom_call.1} parent=1 // pred_fallthru
      _
    %v36 = vld [vmem:[%s0] sm:$0xff]
    %v37 = vld [vmem:[%s0 + $0x8] sm:$0xff]
    %v38 = vld [vmem:[%s0 + $0x10] sm:$0xff]
    %v39 = vld [vmem:[%s0 + $0x18] sm:$0xff]
    %v40 = vld [vmem:[%s1] sm:$0xff]
    %v41 = vld [vmem:[%s1 + $0x8] sm:$0xff]
    %v42 = vld [vmem:[%s1 + $0x10] sm:$0xff]
    %v43 = vld [vmem:[%s1 + $0x18] sm:$0xff]
    %v44 = vld [vmem:[%s1 + $0x20] sm:$0x3]
    %v45 = vld [vmem:[%s1 + $0x28] sm:$0x3]
    %v46 = vld [vmem:[%s2] sm:$0x3]
    %v48 = vperm.slane %v46, 0
    %v49 = vperm.slane %v46, 1
    %vm52 = vcmask 146432
    %v54 = vsel %vm52, %v36, 0
    %v57 = vsel %vm52, %v37, 0
    %v60 = vsel %vm52, %v38, 0
    %v63 = vsel %vm52, %v39, 0
    %vm65 = vcmask 1041408
    %v67 = vsel %vm65, %v44, 0
    %v70 = vsel %vm65, %v45, 0
    %72 = vmatpush.msra.mxu0 0.0
    %73 = vmatpush.msra.mxu0 0.0
    %74 = vmatpush.msra.mxu0 0.0
    %75 = vmatpush.msra.mxu0 0.0
    %76 = vmatpush.msra.mxu0 0.0
    %77 = vmatpush.msra.mxu0 0.0
    %78 = vmatpush.msra.mxu0 0.0
    %79 = vmatpush.msra.mxu0 0.0
    %80 = vmatpush.msra.mxu0 0.0
    %81 = vmatpush.msra.mxu0 0.0
    %82 = vmatpush.msra.mxu0 0.0
    %83 = vmatpush.msra.mxu0 0.0
    %84 = vmatpush.msra.mxu0 0.0
    %85 = vmatpush.msra.mxu0 %v67
    %86 = vmatpush.msra.mxu0 %v42
    %87 = vmatpush.msra.mxu0 %v40
    %88 = vmatmul.f32.gmra.mxu0 %v54
    %v89 = vpop.f32.mrf.mxu0
    %v90 = vadd.f32 %v48, %v89
    %91 = vmatmul.f32.gmra.mxu0 %v57
    %v92 = vpop.f32.mrf.mxu0
    %v93 = vadd.f32 %v48, %v92
    %94 = vmatmul.f32.gmra.mxu0 %v60
    %v95 = vpop.f32.mrf.mxu0
    %v96 = vadd.f32 %v48, %v95
    %97 = vmatmul.f32.gmra.mxu0 %v63
    %v98 = vpop.f32.mrf.mxu0
    %v99 = vadd.f32 %v48, %v98
    %100 = vdwg.mxu0
    %101 = vmatpush.msra.mxu0 0.0
    %102 = vmatpush.msra.mxu0 0.0
    %103 = vmatpush.msra.mxu0 0.0
    %104 = vmatpush.msra.mxu0 0.0
    %105 = vmatpush.msra.mxu0 0.0
    %106 = vmatpush.msra.mxu0 0.0
    %107 = vmatpush.msra.mxu0 0.0
    %108 = vmatpush.msra.mxu0 0.0
    %109 = vmatpush.msra.mxu0 0.0
    %110 = vmatpush.msra.mxu0 0.0
    %111 = vmatpush.msra.mxu0 0.0
    %112 = vmatpush.msra.mxu0 0.0
    %113 = vmatpush.msra.mxu0 0.0
    %114 = vmatpush.msra.mxu0 %v70
    %115 = vmatpush.msra.mxu0 %v43
    %116 = vmatpush.msra.mxu0 %v41
    %117 = vmatmul.f32.gmra.mxu0 %v54
    %v118 = vpop.f32.mrf.mxu0
    %v119 = vadd.f32 %v49, %v118
    %120 = vmatmul.f32.gmra.mxu0 %v57
    %v121 = vpop.f32.mrf.mxu0
    %v122 = vadd.f32 %v49, %v121
    %123 = vmatmul.f32.gmra.mxu0 %v60
    %v124 = vpop.f32.mrf.mxu0
    %v125 = vadd.f32 %v49, %v124
    %126 = vmatmul.f32.gmra.mxu0 %v63
    %v127 = vpop.f32.mrf.mxu0
    %v128 = vadd.f32 %v49, %v127
    %129 = vdwg.mxu0
    %v130 = vmax.f32 %v90, 0.0
    %v131 = vmax.f32 %v119, 0.0
    %v132 = vmax.f32 %v93, 0.0
    %v133 = vmax.f32 %v122, 0.0
    %v134 = vmax.f32 %v96, 0.0
    %v135 = vmax.f32 %v125, 0.0
    %v136 = vmax.f32 %v99, 0.0
    %v137 = vmax.f32 %v128, 0.0
    %v138 = vpack.c.bf16 %v132, %v130
    %v139 = vpack.c.bf16 %v133, %v131
    %v140 = vpack.c.bf16 %v136, %v134
    %v141 = vpack.c.bf16 %v137, %v135
    %v142 = vld [vmem:[#allocation2] sm:$0xf]
    %v143 = vld [vmem:[#allocation2 + $0x4] sm:$0xf]
    %v144 = vld [vmem:[#allocation2 + $0x8] sm:$0xf]
    %v145 = vld [vmem:[#allocation2 + $0xc] sm:$0xf]
    %v146 = vld [vmem:[#allocation2 + $0x10] sm:$0xf]
    %v147 = vld [vmem:[#allocation2 + $0x14] sm:$0xf]
    %v148 = vld [vmem:[#allocation2 + $0x18] sm:$0xf]
    %v149 = vld [vmem:[#allocation2 + $0x1c] sm:$0xf]
    %v150 = vld [vmem:[#allocation2 + $0x20] sm:$0xf]
    %v151 = vld [vmem:[#allocation2 + $0x24] sm:$0xf]
    %v152 = vld [vmem:[#allocation2 + $0x28] sm:$0xf]
    %v153 = vld [vmem:[#allocation2 + $0x2c] sm:$0xf]
    %v154 = vld [vmem:[#allocation2 + $0x30] sm:$0xf]
    %v155 = vld [vmem:[#allocation2 + $0x34] sm:$0xf]
    %v156 = vld [vmem:[#allocation2 + $0x38] sm:$0xf]
    %v157 = vld [vmem:[#allocation2 + $0x3c] sm:$0xf]
    %v158 = vld [vmem:[#allocation2 + $0x40] sm:$0xf]
    %v159 = vld [vmem:[#allocation2 + $0x44] sm:$0xf]
    %v160 = vld [vmem:[#allocation2 + $0x48] sm:$0xf]
    %v161 = vld [vmem:[#allocation2 + $0x4c] sm:$0xf]
    %v162 = vld [vmem:[#allocation2 + $0x50] sm:$0xf]
    %v163 = vld [vmem:[#allocation2 + $0x54] sm:$0xf]
    %v164 = vld [vmem:[#allocation2 + $0x58] sm:$0xf]
    %v165 = vld [vmem:[#allocation2 + $0x5c] sm:$0xf]
    %v166 = vld [vmem:[#allocation2 + $0x60] sm:$0xf]
    %v167 = vld [vmem:[#allocation2 + $0x64] sm:$0xf]
    %v168 = vld [vmem:[#allocation2 + $0x68] sm:$0xf]
    %v169 = vld [vmem:[#allocation2 + $0x6c] sm:$0xf]
    %v170 = vld [vmem:[#allocation2 + $0x70] sm:$0xf]
    %v171 = vld [vmem:[#allocation2 + $0x74] sm:$0xf]
    %v172 = vld [vmem:[#allocation2 + $0x78] sm:$0xf]
    %v173 = vld [vmem:[#allocation2 + $0x7c] sm:$0xf]
    %v174 = vld [vmem:[%s4] sm:$0x1]
    %v176 = vperm.slane %v174, 0
    %v210 = vunpack.c.l.b16 %v142
    %v211 = vunpack.c.l.b16 %v143
    %v212 = vunpack.c.l.b16 %v144
    %v213 = vunpack.c.l.b16 %v145
    %v214 = vunpack.c.l.b16 %v146
    %v215 = vunpack.c.l.b16 %v147
    %v216 = vunpack.c.l.b16 %v148
    %v217 = vunpack.c.l.b16 %v149
    %v218 = vunpack.c.l.b16 %v150
    %v219 = vunpack.c.l.b16 %v151
    %v220 = vunpack.c.l.b16 %v152
    %v221 = vunpack.c.l.b16 %v153
    %v222 = vunpack.c.l.b16 %v154
    %v223 = vunpack.c.l.b16 %v155
    %v224 = vunpack.c.l.b16 %v156
    %v225 = vunpack.c.l.b16 %v157
    %v226 = vunpack.c.l.b16 %v158
    %v227 = vunpack.c.l.b16 %v159
    %v228 = vunpack.c.l.b16 %v160
    %v229 = vunpack.c.l.b16 %v161
    %v230 = vunpack.c.l.b16 %v162
    %v231 = vunpack.c.l.b16 %v163
    %v232 = vunpack.c.l.b16 %v164
    %v233 = vunpack.c.l.b16 %v165
    %v234 = vunpack.c.l.b16 %v166
    %v235 = vunpack.c.l.b16 %v167
    %v236 = vunpack.c.l.b16 %v168
    %v237 = vunpack.c.l.b16 %v169
    %v238 = vunpack.c.l.b16 %v170
    %v239 = vunpack.c.l.b16 %v171
    %v240 = vunpack.c.l.b16 %v172
    %v241 = vunpack.c.l.b16 %v173
    %v242 = vpack.c.b16 %v211, %v210
    %v243 = vpack.c.b16 %v213, %v212
    %v244 = vpack.c.b16 %v215, %v214
    %v245 = vpack.c.b16 %v217, %v216
    %v246 = vpack.c.b16 %v219, %v218
    %v247 = vpack.c.b16 %v221, %v220
    %v248 = vpack.c.b16 %v223, %v222
    %v249 = vpack.c.b16 %v225, %v224
    %v250 = vpack.c.b16 %v227, %v226
    %v251 = vpack.c.b16 %v229, %v228
    %v252 = vpack.c.b16 %v231, %v230
    %v253 = vpack.c.b16 %v233, %v232
    %v254 = vpack.c.b16 %v235, %v234
    %v255 = vpack.c.b16 %v237, %v236
    %v256 = vpack.c.b16 %v239, %v238
    %v257 = vpack.c.b16 %v241, %v240
    %274 = vmatpush.bf16.msra.mxu0 %v249
    %275 = vmatpush.bf16.msra.mxu0 %v248
    %276 = vmatpush.bf16.msra.mxu0 %v247
    %277 = vmatpush.bf16.msra.mxu0 %v246
    %278 = vmatpush.bf16.msra.mxu0 %v245
    %279 = vmatpush.bf16.msra.mxu0 %v244
    %280 = vmatpush.bf16.msra.mxu0 %v243
    %281 = vmatpush.bf16.msra.mxu0 %v242
    %282 = vmatmul.bf16.gmra.mxu0 %v138
    %v283 = vpop.f32.mrf.mxu0
    %v284 = vadd.f32 %v176, %v283
    %v285 = vpop.f32.mrf.mxu0
    %v286 = vadd.f32 %v176, %v285
    %287 = vmatmul.bf16.gmra.mxu0 %v140
    %v288 = vpop.f32.mrf.mxu0
    %v289 = vadd.f32 %v176, %v288
    %v290 = vpop.f32.mrf.mxu0
    %v291 = vadd.f32 %v176, %v290
    %292 = vdwg.mxu0
    %293 = vmatpush.bf16.msra.mxu0 %v257
    %294 = vmatpush.bf16.msra.mxu0 %v256
    %295 = vmatpush.bf16.msra.mxu0 %v255
    %296 = vmatpush.bf16.msra.mxu0 %v254
    %297 = vmatpush.bf16.msra.mxu0 %v253
    %298 = vmatpush.bf16.msra.mxu0 %v252
    %299 = vmatpush.bf16.msra.mxu0 %v251
    %300 = vmatpush.bf16.msra.mxu0 %v250
    %301 = vmatmul.bf16.gmra.mxu0 %v139
    %v302 = vpop.f32.mrf.mxu0
    %v303 = vadd.f32 %v284, %v302
    %v304 = vpop.f32.mrf.mxu0
    %v305 = vadd.f32 %v286, %v304
    %306 = vmatmul.bf16.gmra.mxu0 %v141
    %v307 = vpop.f32.mrf.mxu0
    %v308 = vadd.f32 %v289, %v307
    %v309 = vpop.f32.mrf.mxu0
    %v310 = vadd.f32 %v291, %v309
    %311 = vdwg.mxu0
    %v312 = vtanh.pop %v303
    %v313 = vtanh.pop %v305
    %v314 = vtanh.pop %v308
    %v315 = vtanh.pop %v310
    %vm316 = vcmask 72704
    %v317 = vsel %vm316, %v312, 0.0
    %318 = vadd.xlane.f32.xlu0 %v317
    %v319 = vpop.xlane.xlu0 %318
    %v320 = vsel %vm316, %v313, 0.0
    %321 = vadd.xlane.f32.xlu0 %v320
    %v322 = vpop.xlane.xlu0 %321
    %v323 = vsel %vm316, %v314, 0.0
    %324 = vadd.xlane.f32.xlu0 %v323
    %v325 = vpop.xlane.xlu0 %324
    %v326 = vsel %vm316, %v315, 0.0
    %327 = vadd.xlane.f32.xlu0 %v326
    %v328 = vpop.xlane.xlu0 %327
    %v329 = vrcp.pop 9.0
    %v330 = vmul.f32 9.0, %v329
    %v331 = vsub.f32 1.0, %v330
    %v332 = vmul.f32 %v329, %v331
    %v333 = vadd.f32 %v329, %v332
    %vm334 = vweird.f32 %v329
    %v335 = vsel %vm334, %v329, %v333
    %v336 = vmul.f32 %v319, %v335
    %v337 = vmul.f32 %v322, %v335
    %v338 = vmul.f32 %v325, %v335
    %v339 = vmul.f32 %v328, %v335
    %341 = vset.pattern.permute.xlu0 9
    %342 = vperm.xlu0 %341, %v312
    %v343 = vpop.permute.xlu0 %342
    %346 = vset.pattern.permute.xlu0 9
    %347 = vperm.xlu0 %346, %v313
    %v348 = vpop.permute.xlu0 %347
    %351 = vset.pattern.permute.xlu0 9
    %352 = vperm.xlu0 %351, %v314
    %v353 = vpop.permute.xlu0 %352
    %356 = vset.pattern.permute.xlu0 9
    %357 = vperm.xlu0 %356, %v315
    %v358 = vpop.permute.xlu0 %357
    %v360 = vadd.f32 %v343, %v312
    %v361 = vadd.f32 %v348, %v313
    %v362 = vadd.f32 %v353, %v314
    %v363 = vadd.f32 %v358, %v315
    %v364 = vsub.f32 %v360, %v336
    %v365 = vsub.f32 %v361, %v337
    %v366 = vsub.f32 %v362, %v338
    %v367 = vsub.f32 %v363, %v339
    %368 = vst.msk [vmem:[%s5] sm:$0xff] %vm316, %v364
    %369 = vst.msk [vmem:[%s5 + $0x8] sm:$0xff] %vm316, %v365
    %370 = vst.msk [vmem:[%s5 + $0x10] sm:$0xff] %vm316, %v366
    %371 = vst.msk [vmem:[%s5 + $0x18] sm:$0xff] %vm316, %v367
    // Predicated region
    $region26: #{tpu_custom_call.1} parent=1 // pred_check
      _
    $region27: #{tpu_custom_call.1} parent=1 // pred_check_branch
      %373 = sbr.rel (0) target = $region29
    $region28: #{tpu_custom_call.1} parent=1 // pred_region
      _
    $region29: #{tpu_custom_call.1} parent=1 // pred_fallthru
      _
    // Predicated region
    $region30: #{tpu_custom_call.1} parent=1 // pred_check
      _
    $region31: #{tpu_custom_call.1} parent=1 // pred_check_branch
      %375 = sbr.rel (0) target = $region33
    $region32: #{tpu_custom_call.1} parent=1 // pred_region
      _
    $region33: #{tpu_custom_call.1} parent=1 // pred_fallthru
      _
    %376 = vsyncpa [#allocation3], 1

</llo_original>
